<compile_context>
chip_gen: v5e
topology: v5e:2x2
jax: 0.10.0
libtpu: 0.0.40
codegen_flags: <defaults>
</compile_context>

<pallas_src>
import functools

import jax
import jax.numpy as jnp
from jax.experimental import pallas as pl
from jax.experimental.pallas import tpu as pltpu


# ---------------------------------------------------------------------------
# Helpers
# ---------------------------------------------------------------------------
def _round_up(x, m):
    return ((x + m - 1) // m) * m


def _fit_tile(dim, preferred, floor):
    """Largest tile <= preferred that divides `dim` (dim is a multiple of floor)."""
    t = min(preferred, dim)
    while dim % t != 0 and t > floor:
        t = max(t // 2, floor)
    return t


# ---------------------------------------------------------------------------
# Kernel: one fused layer  y = dropout(relu(x @ W + b))
# ---------------------------------------------------------------------------
def _fcc_layer_kernel(*refs, p_dropout, dropout_threshold, apply_dropout):
    if apply_dropout:
        x_ref, w_ref, b_ref, rnd_ref, o_ref, acc_ref = refs
    else:
        x_ref, w_ref, b_ref, o_ref, acc_ref = refs
        rnd_ref = None

    k = pl.program_id(2)

    @pl.when(k == 0)
    def _init():
        acc_ref[...] = jnp.zeros_like(acc_ref)

    acc_ref[...] += jnp.dot(
        x_ref[...], w_ref[...], preferred_element_type=jnp.float32
    )

    @pl.when(k == pl.num_programs(2) - 1)
    def _epilogue():
        y = acc_ref[...] + b_ref[...]      # (1, tn) bias broadcast, added once
        y = jnp.maximum(y, 0.0)            # ReLU
        if apply_dropout:
            keep = rnd_ref[...] >= jnp.uint32(dropout_threshold)
            y = jnp.where(keep, y * (1.0 / (1.0 - p_dropout)), 0.0)
        o_ref[...] = y.astype(o_ref.dtype)


# ---------------------------------------------------------------------------
# Wrapper: one layer as a tiled pallas_call (all dims pre-padded)
# ---------------------------------------------------------------------------
def fcc_layer(x, w, b, rnd=None, p_dropout=0.0, apply_dropout=False,
              tm_pref=256, tn_pref=512, tk_pref=512):
    """x:(M,K)  w:(K,N)  b:(1,N)  rnd:(M,N) uint32 (only if apply_dropout)."""
    M, K = x.shape
    K2, N = w.shape
    assert K == K2 and b.shape == (1, N)

    tm = _fit_tile(M, tm_pref, 8)
    tn = _fit_tile(N, tn_pref, 128)
    tk = _fit_tile(K, tk_pref, 128)
    grid = (M // tm, N // tn, K // tk)

    dropout_threshold = 0
    if apply_dropout:
        assert rnd is not None and rnd.shape == (M, N)
        dropout_threshold = min(int(round(p_dropout * 4294967296.0)), 4294967295)

    in_specs = [
        pl.BlockSpec((tm, tk), lambda i, j, k: (i, k)),   # x tile
        pl.BlockSpec((tk, tn), lambda i, j, k: (k, j)),   # W tile
        pl.BlockSpec((1, tn), lambda i, j, k: (0, j)),    # bias (epilogue only)
    ]
    args = [x, w, b]
    if apply_dropout:
        in_specs.append(pl.BlockSpec((tm, tn), lambda i, j, k: (i, j)))
        args.append(rnd)

    bytes_accessed = (x.size + w.size + b.size + M * N) * 4
    if apply_dropout:
        bytes_accessed += M * N * 4

    kernel = functools.partial(
        _fcc_layer_kernel,
        p_dropout=float(p_dropout),
        dropout_threshold=dropout_threshold,
        apply_dropout=apply_dropout,
    )

    return pl.pallas_call(
        kernel,
        out_shape=jax.ShapeDtypeStruct((M, N), x.dtype),
        grid_spec=pltpu.PrefetchScalarGridSpec(
            num_scalar_prefetch=0,
            grid=grid,
            in_specs=in_specs,
            out_specs=pl.BlockSpec((tm, tn), lambda i, j, k: (i, j)),
            scratch_shapes=[pltpu.VMEM((tm, tn), jnp.float32)],
        ),
        compiler_params=pltpu.CompilerParams(
            dimension_semantics=("parallel", "parallel", "arbitrary"),
            vmem_limit_bytes=48 * 1024 * 1024,
        ),
        cost_estimate=pl.CostEstimate(
            flops=2 * M * N * K,
            transcendentals=0,
            bytes_accessed=bytes_accessed,
        ),
    )(*args)


# ---------------------------------------------------------------------------
# FCC module (JAX/Pallas port of the PyTorch module)
# ---------------------------------------------------------------------------
class FCC:
    """list_layers gives each linear layer's output width; the input width of
    layer 0 is given by `in_features` (equivalent of nn.LazyLinear binding)."""

    def __init__(self, list_layers, p_dropout, in_features, key):
        self.p_dropout = float(p_dropout)
        self.in_features = int(in_features)
        self.out_features = int(list_layers[-1])

        self.ref_params = []   # unpadded (w, b) for reference / inspection
        self.params = []       # lane-dense padded (w_p, b_p)

        d_in = in_features
        for d_out in list_layers:
            key, wk, bk = jax.random.split(key, 3)
            # match nn.Linear default init: U(-1/sqrt(fan_in), 1/sqrt(fan_in))
            bound = 1.0 / float(d_in) ** 0.5
            w = jax.random.uniform(wk, (d_in, d_out), jnp.float32, -bound, bound)
            b = jax.random.uniform(bk, (d_out,), jnp.float32, -bound, bound)
            self.ref_params.append((w, b))

            d_in_p = _round_up(d_in, 128)
            d_out_p = _round_up(d_out, 128)
            w_p = jnp.pad(w, ((0, d_in_p - d_in), (0, d_out_p - d_out)))
            b_p = jnp.pad(b, (0, d_out_p - d_out)).reshape(1, d_out_p)
            self.params.append((w_p, b_p))
            d_in = d_out

    def __call__(self, x, training=False, rng_key=None):
        B, Din = x.shape
        assert Din == self.in_features
        pad_B = _round_up(B, 8)
        pad_Din = _round_up(Din, 128)
        xp = jnp.pad(x, ((0, pad_B - B), (0, pad_Din - Din)))

        use_dropout = training and self.p_dropout > 0.0
        if use_dropout and rng_key is None:
            rng_key = jax.random.PRNGKey(0)

        for (w_p, b_p) in self.params:
            rnd = None
            if use_dropout:
                rng_key, sub = jax.random.split(rng_key)  # fresh mask per layer
                rnd = jax.random.bits(sub, (pad_B, w_p.shape[1]), jnp.uint32)
            xp = fcc_layer(xp, w_p, b_p, rnd,
                           p_dropout=self.p_dropout,
                           apply_dropout=use_dropout)

        return xp[:B, :self.out_features]


# ---------------------------------------------------------------------------
# Demo / smoke test
# ---------------------------------------------------------------------------
if __name__ == "__main__":
    key = jax.random.PRNGKey(0)
    key, xkey, pkey, dkey = jax.random.split(key, 4)

    # Small but lane-dense shapes (features multiples of 128, batch mult. of 8)
    batch, in_features = 8, 128
    list_layers = [256, 128]
    p_dropout = 0.1

    x = jax.random.normal(xkey, (batch, in_features), dtype=jnp.float32)
    model = FCC(list_layers, p_dropout, in_features=in_features, key=pkey)

    # eval-mode forward (dropout = identity, like PyTorch model.eval())
    y_eval = model(x, training=False)
    jax.block_until_ready(y_eval)
    assert y_eval.shape == (batch, list_layers[-1])

    # correctness check of the eval path against plain JAX
    ref = x
    for w, b in model.ref_params:
        ref = jnp.maximum(ref @ w + b, 0.0)
    assert jnp.allclose(y_eval, ref, atol=2e-2, rtol=2e-2)

    # training-mode forward exercises the fused dropout epilogue
    y_train = model(x, training=True, rng_key=dkey)
    jax.block_until_ready(y_train)
    assert y_train.shape == (batch, list_layers[-1])
    assert bool(jnp.all(jnp.isfinite(y_train)))

    print("KERNEL_OK")
</pallas_src>

<mosaic_0001>
module attributes {stable_mosaic.version = 11 : i64} {
  func.func @_fcc_layer_kernel(%arg0: i32, %arg1: i32, %arg2: i32, %arg3: memref<8x128xf32, #tpu.memory_space<vmem>>, %arg4: memref<128x256xf32, #tpu.memory_space<vmem>>, %arg5: memref<1x256xf32, #tpu.memory_space<vmem>>, %arg6: memref<8x256xf32, #tpu.memory_space<vmem>>, %arg7: memref<8x256xf32, #tpu.memory_space<vmem>>) attributes {dimension_semantics = [#tpu.dimension_semantics<parallel>, #tpu.dimension_semantics<parallel>, #tpu.dimension_semantics<arbitrary>], iteration_bounds = array<i64: 1, 1, 1>, scalar_prefetch = 0 : i64, scratch_operands = 1 : i64, tpu.core_type = #tpu.core_type<tc>, window_params = [{transform_indices = @transform_0, window_bounds = array<i64: 8, 128>}, {transform_indices = @transform_1, window_bounds = array<i64: 128, 256>}, {transform_indices = @transform_2, window_bounds = array<i64: 1, 256>}, {transform_indices = @transform_3, window_bounds = array<i64: 8, 256>}]} {
    %c0_i32 = arith.constant 0 : i32
    %0 = arith.cmpi eq, %arg2, %c0_i32 : i32
    %1 = arith.extui %0 : i1 to i32
    %c0_i32_0 = arith.constant 0 : i32
    %2 = arith.cmpi ne, %1, %c0_i32_0 : i32
    scf.if %2 {
      %cst_10 = arith.constant 0.000000e+00 : f32
      %12 = vector.broadcast %cst_10 : f32 to vector<8x256xf32>
      %c0_11 = arith.constant 0 : index
      %c0_12 = arith.constant 0 : index
      %13 = vector.load %arg7[%c0_11, %c0_12] : memref<8x256xf32, #tpu.memory_space<vmem>>, vector<8x256xf32>
      tpu.vector_store %arg7[%c0_11, %c0_12], %12 {strides = array<i32>} : memref<8x256xf32, #tpu.memory_space<vmem>>, vector<8x256xf32>,
    } else {
    }
    %c0 = arith.constant 0 : index
    %c0_1 = arith.constant 0 : index
    %3 = vector.load %arg7[%c0, %c0_1] : memref<8x256xf32, #tpu.memory_space<vmem>>, vector<8x256xf32>
    %c0_2 = arith.constant 0 : index
    %c0_3 = arith.constant 0 : index
    %4 = vector.load %arg3[%c0_2, %c0_3] : memref<8x128xf32, #tpu.memory_space<vmem>>, vector<8x128xf32>
    %c0_4 = arith.constant 0 : index
    %c0_5 = arith.constant 0 : index
    %5 = vector.load %arg4[%c0_4, %c0_5] : memref<128x256xf32, #tpu.memory_space<vmem>>, vector<128x256xf32>
    %cst = arith.constant dense<0.000000e+00> : vector<8x256xf32>
    %6 = tpu.matmul %4, %5, %cst {dimension_numbers = #tpu.dot_dimension_numbers<[1], [0], [0], [1], [0, 0, 1, 1], [], []>} : vector<8x128xf32>, vector<128x256xf32>, vector<8x256xf32> -> vector<8x256xf32>
    %7 = arith.addf %3, %6 : vector<8x256xf32>
    %c0_6 = arith.constant 0 : index
    %c0_7 = arith.constant 0 : index
    %8 = vector.load %arg7[%c0_6, %c0_7] : memref<8x256xf32, #tpu.memory_space<vmem>>, vector<8x256xf32>
    tpu.vector_store %arg7[%c0_6, %c0_7], %7 {strides = array<i32>} : memref<8x256xf32, #tpu.memory_space<vmem>>, vector<8x256xf32>,
    %c0_i32_8 = arith.constant 0 : i32
    %9 = arith.cmpi eq, %arg2, %c0_i32_8 : i32
    %10 = arith.extui %9 : i1 to i32
    %c0_i32_9 = arith.constant 0 : i32
    %11 = arith.cmpi ne, %10, %c0_i32_9 : i32
    scf.if %11 {
      %c0_10 = arith.constant 0 : index
      %c0_11 = arith.constant 0 : index
      %12 = vector.load %arg7[%c0_10, %c0_11] : memref<8x256xf32, #tpu.memory_space<vmem>>, vector<8x256xf32>
      %c0_12 = arith.constant 0 : index
      %c0_13 = arith.constant 0 : index
      %13 = vector.load %arg5[%c0_12, %c0_13] : memref<1x256xf32, #tpu.memory_space<vmem>>, vector<1x256xf32>
      %14 = vector.broadcast %13 : vector<1x256xf32> to vector<8x256xf32>
      %15 = arith.addf %12, %14 : vector<8x256xf32>
      %cst_14 = arith.constant 0.000000e+00 : f32
      %16 = vector.broadcast %cst_14 : f32 to vector<8x256xf32>
      %17 = arith.maximumf %15, %16 : vector<8x256xf32>
      %c0_15 = arith.constant 0 : index
      %c0_16 = arith.constant 0 : index
      %18 = vector.load %arg6[%c0_15, %c0_16] : memref<8x256xf32, #tpu.memory_space<vmem>>, vector<8x256xf32>
      tpu.vector_store %arg6[%c0_15, %c0_16], %17 {strides = array<i32>} : memref<8x256xf32, #tpu.memory_space<vmem>>, vector<8x256xf32>,
    } else {
    }
    return
  }
  func.func @transform_0(%arg0: i32, %arg1: i32, %arg2: i32) -> (i32, i32) {
    %c0_i32 = arith.constant 0 : i32
    return %arg0, %arg2 : i32, i32
  }
  func.func @transform_1(%arg0: i32, %arg1: i32, %arg2: i32) -> (i32, i32) {
    %c0_i32 = arith.constant 0 : i32
    return %arg2, %arg1 : i32, i32
  }
  func.func @transform_2(%arg0: i32, %arg1: i32, %arg2: i32) -> (i32, i32) {
    %c0_i32 = arith.constant 0 : i32
    %c0_i32_0 = arith.constant 0 : i32
    return %c0_i32, %arg1 : i32, i32
  }
  func.func @transform_3(%arg0: i32, %arg1: i32, %arg2: i32) -> (i32, i32) {
    %c0_i32 = arith.constant 0 : i32
    return %arg0, %arg1 : i32, i32
  }
}

</mosaic_0001>

<llo_original>
// kernel: tpu_custom_call.1
$region0: #{tpu_custom_call.1}
  #allocation0 [shape = 'u32[]', space=smem, size = 0x4, offset = 0x4, fixed_abs, tag = 'smem constant byte address 0x4 - core index']
  #allocation1 [shape = 'u32[72,128]{1,0:T(1,128)}', space=vmem, size = 0x9000, scoped, tag = 'internal scratch']
  #allocation2 [shape = 'f32[8,256]{1,0:T(8,128)}', space=vmem, size = 0x2000, scoped, tag = 'scratch operand']
  %s0 = inlined_call_operand.hbm [shape: f32[8,128], index: 0, kind: input, shape index: {}]
  %s1 = inlined_call_operand.hbm [shape: f32[128,256], index: 1, kind: input, shape index: {}]
  %s2 = inlined_call_operand.hbm [shape: f32[1,256], index: 2, kind: input, shape index: {}]
  %s3 = inlined_call_operand.hbm [shape: f32[8,256], index: 3, kind: output, shape index: {}]
  %s4 = sld [smem:[#allocation0]]
  $region42: #{tpu_custom_call.1} parent=0
    _
  %s6 = ssub.s32 1, %s4
  %s7 = scalar_select 0, %s6, %s4
  $region1: #{tpu_custom_call.1} parent=0
    #allocation3 [shape = 'u8[4096]{0}', space=vmem, size = 0x1000, scoped, tag = 'input window, operand 0, single buffered']
    #allocation4 [shape = 's32[1]{0}', space=sflag, size = 0x4, scoped, tag = 'scoped memory for tpu_custom_call.1']
    #allocation5 [shape = 's32[1]{0}', space=sflag, size = 0x4, scoped, tag = 'scoped memory for tpu_custom_call.1']
    #allocation6 [shape = 'u8[131072]{0}', space=vmem, size = 0x20000, scoped, tag = 'input window, operand 1, single buffered']
    #allocation7 [shape = 's32[1]{0}', space=sflag, size = 0x4, scoped, tag = 'scoped memory for tpu_custom_call.1']
    #allocation8 [shape = 'u8[1024]{0}', space=vmem, size = 0x400, scoped, tag = 'input window, operand 2, single buffered']
    #allocation9 [shape = 'u8[8192]{0}', space=vmem, size = 0x2000, scoped, tag = 'output window, operand 0, single buffered']
    %8 = vsyncpa [#allocation4], 0
    %9 = vsyncpa [#allocation7], 0
    %10 = vsyncpa [#allocation5], 0
    // Predicated region
    $region2: #{tpu_custom_call.1} parent=1 // pred_check
      _
    $region3: #{tpu_custom_call.1} parent=1 // pred_check_branch
      %12 = sbr.rel (0) target = $region5
    $region4: #{tpu_custom_call.1} parent=1 // pred_region
      %14 = vsyncadd [#allocation4], 0
      %s16 = sshll.u32 %s0, 4
      %s17 = int_to_ptr.hbm [resolvable:$true] %s16
      %s18 = sshll.u32 [#allocation3], 4
      %s19 = int_to_ptr.vmem [resolvable:$true] %s18
      %21 = dma.hbm_to_vmem [thread:$0]  %s17, 128, %s19, [#allocation4]
    $region5: #{tpu_custom_call.1} parent=1 // pred_fallthru
      _
    // Predicated region
    $region6: #{tpu_custom_call.1} parent=1 // pred_check
      _
    $region7: #{tpu_custom_call.1} parent=1 // pred_check_branch
      %23 = sbr.rel (0) target = $region9
    $region8: #{tpu_custom_call.1} parent=1 // pred_region
      %25 = vsyncadd [#allocation7], 0
      %s26 = sshll.u32 %s1, 4
      %s27 = int_to_ptr.hbm [resolvable:$true] %s26
      %s28 = sshll.u32 [#allocation6], 4
      %s29 = int_to_ptr.vmem [resolvable:$true] %s28
      %34 = dma.hbm_to_vmem [thread:$0]  %s27, 4096, %s29, [#allocation7], 256, 256, 16
    $region9: #{tpu_custom_call.1} parent=1 // pred_fallthru
      _
    // Predicated region
    $region10: #{tpu_custom_call.1} parent=1 // pred_check
      _
    $region11: #{tpu_custom_call.1} parent=1 // pred_check_branch
      %36 = sbr.rel (0) target = $region13
    $region12: #{tpu_custom_call.1} parent=1 // pred_region
      %38 = vsyncadd [#allocation7], 0
      %s40 = sshll.u32 %s2, 4
      %s41 = int_to_ptr.hbm [resolvable:$true] %s40
      %s42 = sshll.u32 [#allocation8], 4
      %s43 = int_to_ptr.vmem [resolvable:$true] %s42
      %45 = dma.hbm_to_vmem [thread:$0]  %s41, 32, %s43, [#allocation7]
    $region13: #{tpu_custom_call.1} parent=1 // pred_fallthru
      _
    // Predicated region
    $region14: #{tpu_custom_call.1} parent=1 // pred_check
      _
    $region15: #{tpu_custom_call.1} parent=1 // pred_check_branch
      %47 = sbr.rel (0) target = $region17
    $region16: #{tpu_custom_call.1} parent=1 // pred_region
      %49 = dma.done [#allocation4], 128
    $region17: #{tpu_custom_call.1} parent=1 // pred_fallthru
      _
    // Predicated region
    $region18: #{tpu_custom_call.1} parent=1 // pred_check
      _
    $region19: #{tpu_custom_call.1} parent=1 // pred_check_branch
      %51 = sbr.rel (0) target = $region21
    $region20: #{tpu_custom_call.1} parent=1 // pred_region
      %53 = dma.done [#allocation7], 4096
    $region21: #{tpu_custom_call.1} parent=1 // pred_fallthru
      _
    // Predicated region
    $region22: #{tpu_custom_call.1} parent=1 // pred_check
      _
    $region23: #{tpu_custom_call.1} parent=1 // pred_check_branch
      %55 = sbr.rel (0) target = $region25
    $region24: #{tpu_custom_call.1} parent=1 // pred_region
      %57 = dma.done [#allocation7], 32
    $region25: #{tpu_custom_call.1} parent=1 // pred_fallthru
      _
    %p58 = scmp.eq.s32.totalorder 0, 0
    // Predicated region
    $region26: #{tpu_custom_call.1} parent=1 // pred_check
      %p59 = pneg %p58
    $region27: #{tpu_custom_call.1} parent=1 // pred_check_branch
      %61 = sbr.rel (%p59) target = $region29
    $region28: #{tpu_custom_call.1} parent=1 // pred_region
      %62 = vst [vmem:[#allocation2] sm:$0xff] 0.0
      %63 = vst [vmem:[#allocation2 + $0x8] sm:$0xff] 0.0
    $region29: #{tpu_custom_call.1} parent=1 // pred_fallthru
      _
    %v64 = vld [vmem:[#allocation2] sm:$0xff]
    %v65 = vld [vmem:[#allocation2 + $0x8] sm:$0xff]
    %v66 = vld [vmem:[#allocation3] sm:$0xff]
    %v67 = vld [vmem:[#allocation6] sm:$0xff]
    %v68 = vld [vmem:[#allocation6 + $0x8] sm:$0xff]
    %v69 = vld [vmem:[#allocation6 + $0x10] sm:$0xff]
    %v70 = vld [vmem:[#allocation6 + $0x18] sm:$0xff]
    %v71 = vld [vmem:[#allocation6 + $0x20] sm:$0xff]
    %v72 = vld [vmem:[#allocation6 + $0x28] sm:$0xff]
    %v73 = vld [vmem:[#allocation6 + $0x30] sm:$0xff]
    %v74 = vld [vmem:[#allocation6 + $0x38] sm:$0xff]
    %v75 = vld [vmem:[#allocation6 + $0x40] sm:$0xff]
    %v76 = vld [vmem:[#allocation6 + $0x48] sm:$0xff]
    %v77 = vld [vmem:[#allocation6 + $0x50] sm:$0xff]
    %v78 = vld [vmem:[#allocation6 + $0x58] sm:$0xff]
    %v79 = vld [vmem:[#allocation6 + $0x60] sm:$0xff]
    %v80 = vld [vmem:[#allocation6 + $0x68] sm:$0xff]
    %v81 = vld [vmem:[#allocation6 + $0x70] sm:$0xff]
    %v82 = vld [vmem:[#allocation6 + $0x78] sm:$0xff]
    %v83 = vld [vmem:[#allocation6 + $0x80] sm:$0xff]
    %v84 = vld [vmem:[#allocation6 + $0x88] sm:$0xff]
    %v85 = vld [vmem:[#allocation6 + $0x90] sm:$0xff]
    %v86 = vld [vmem:[#allocation6 + $0x98] sm:$0xff]
    %v87 = vld [vmem:[#allocation6 + $0xa0] sm:$0xff]
    %v88 = vld [vmem:[#allocation6 + $0xa8] sm:$0xff]
    %v89 = vld [vmem:[#allocation6 + $0xb0] sm:$0xff]
    %v90 = vld [vmem:[#allocation6 + $0xb8] sm:$0xff]
    %v91 = vld [vmem:[#allocation6 + $0xc0] sm:$0xff]
    %v92 = vld [vmem:[#allocation6 + $0xc8] sm:$0xff]
    %v93 = vld [vmem:[#allocation6 + $0xd0] sm:$0xff]
    %v94 = vld [vmem:[#allocation6 + $0xd8] sm:$0xff]
    %v95 = vld [vmem:[#allocation6 + $0xe0] sm:$0xff]
    %v96 = vld [vmem:[#allocation6 + $0xe8] sm:$0xff]
    %v97 = vld [vmem:[#allocation6 + $0xf0] sm:$0xff]
    %v98 = vld [vmem:[#allocation6 + $0xf8] sm:$0xff]
    %99 = vmatpush.msra.mxu0 %v97
    %100 = vmatpush.msra.mxu0 %v95
    %101 = vmatpush.msra.mxu0 %v93
    %102 = vmatpush.msra.mxu0 %v91
    %103 = vmatpush.msra.mxu0 %v89
    %104 = vmatpush.msra.mxu0 %v87
    %105 = vmatpush.msra.mxu0 %v85
    %106 = vmatpush.msra.mxu0 %v83
    %107 = vmatpush.msra.mxu0 %v81
    %108 = vmatpush.msra.mxu0 %v79
    %109 = vmatpush.msra.mxu0 %v77
    %110 = vmatpush.msra.mxu0 %v75
    %111 = vmatpush.msra.mxu0 %v73
    %112 = vmatpush.msra.mxu0 %v71
    %113 = vmatpush.msra.mxu0 %v69
    %114 = vmatpush.msra.mxu0 %v67
    %115 = vmatmul.f32.gmra.mxu0 %v66
    %v116 = vpop.f32.mrf.mxu0
    %v117 = vadd.f32 0.0, %v116
    %118 = vdwg.mxu0
    %119 = vmatpush.msra.mxu0 %v98
    %120 = vmatpush.msra.mxu0 %v96
    %121 = vmatpush.msra.mxu0 %v94
    %122 = vmatpush.msra.mxu0 %v92
    %123 = vmatpush.msra.mxu0 %v90
    %124 = vmatpush.msra.mxu0 %v88
    %125 = vmatpush.msra.mxu0 %v86
    %126 = vmatpush.msra.mxu0 %v84
    %127 = vmatpush.msra.mxu0 %v82
    %128 = vmatpush.msra.mxu0 %v80
    %129 = vmatpush.msra.mxu0 %v78
    %130 = vmatpush.msra.mxu0 %v76
    %131 = vmatpush.msra.mxu0 %v74
    %132 = vmatpush.msra.mxu0 %v72
    %133 = vmatpush.msra.mxu0 %v70
    %134 = vmatpush.msra.mxu0 %v68
    %135 = vmatmul.f32.gmra.mxu0 %v66
    %v136 = vpop.f32.mrf.mxu0
    %v137 = vadd.f32 0.0, %v136
    %138 = vdwg.mxu0
    %v139 = vadd.f32 %v64, %v117
    %v140 = vadd.f32 %v65, %v137
    %141 = vst [vmem:[#allocation2] sm:$0xff] %v139
    %142 = vst [vmem:[#allocation2 + $0x8] sm:$0xff] %v140
    // Predicated region
    $region30: #{tpu_custom_call.1} parent=1 // pred_check
      %p143 = pneg %p58
    $region31: #{tpu_custom_call.1} parent=1 // pred_check_branch
      %145 = sbr.rel (%p143) target = $region33
    $region32: #{tpu_custom_call.1} parent=1 // pred_region
      %v146 = vld [vmem:[#allocation2] sm:$0xff]
      %v147 = vld [vmem:[#allocation2 + $0x8] sm:$0xff]
      %v148 = vld [vmem:[#allocation8] sm:$0x3]
      %v150 = vperm.slane %v148, 0
      %v151 = vperm.slane %v148, 1
      %v154 = vadd.f32 %v146, %v150
      %v155 = vadd.f32 %v147, %v151
      %v156 = vmax.f32 %v154, 0.0
      %v157 = vmax.f32 %v155, 0.0
      %158 = vst [vmem:[#allocation9] sm:$0xff] %v156
      %159 = vst [vmem:[#allocation9 + $0x8] sm:$0xff] %v157
    $region33: #{tpu_custom_call.1} parent=1 // pred_fallthru
      _
    // Predicated region
    $region34: #{tpu_custom_call.1} parent=1 // pred_check
      _
    $region35: #{tpu_custom_call.1} parent=1 // pred_check_branch
      %161 = sbr.rel (0) target = $region37
    $region36: #{tpu_custom_call.1} parent=1 // pred_region
      %163 = vsyncadd [#allocation5], 0
      %s165 = sshll.u32 [#allocation9], 4
      %s166 = int_to_ptr.vmem [resolvable:$true] %s165
      %s167 = sshll.u32 %s3, 4
      %s168 = int_to_ptr.hbm [resolvable:$true] %s167
      %170 = dma.vmem_to_hbm [thread:$0]  %s166, 256, %s168, [#allocation5]
    $region37: #{tpu_custom_call.1} parent=1 // pred_fallthru
      _
    // Predicated region
    $region38: #{tpu_custom_call.1} parent=1 // pred_check
      _
    $region39: #{tpu_custom_call.1} parent=1 // pred_check_branch
      %172 = sbr.rel (0) target = $region41
    $region40: #{tpu_custom_call.1} parent=1 // pred_region
      %174 = dma.done [#allocation5], 256
    $region41: #{tpu_custom_call.1} parent=1 // pred_fallthru
      _
    %175 = vsyncpa [#allocation4], 1
    %176 = vsyncpa [#allocation7], 1
    %177 = vsyncpa [#allocation5], 1

</llo_original>
